<compile_context>
chip_gen: v7x
topology: tpu7x:2x2x1
jax: 0.10.0
libtpu: 0.0.40
codegen_flags: <defaults>
</compile_context>

<pallas_src>
import functools

import jax
import jax.numpy as jnp
from jax import lax
from jax.experimental import pallas as pl
from jax.experimental.pallas import tpu as pltpu

BACKBONE_DIM = 192    # projector input dim (nn.Linear(192, 96))
PROJ_DIM = 96         # projector output dim
BACKBONE_PAD = 256    # zero-padded, lane/MXU-aligned widths (exact math)
PROJ_PAD = 128


def _simclr_kernel(f1_ref, f2_ref, m1_ref, m2_ref,
                   wb_ref, bb_ref, wp_ref, bp_ref,
                   out_ref, reps_ref,
                   *, batch_size, batch_tile, temperature, use_cosine_similarity):
    f32 = jnp.float32
    B = batch_size
    TB = batch_tile
    i = pl.program_id(0)

    def pooled(f_ref, m_ref):
        # TODO(synk): the real SimCLR backbone is an arbitrary user module; this
        # synthetic stand-in = masked mean pooling over the sequence (+ Linear below).
        f = f_ref[...].astype(f32)                                   # (TB, S, H)
        m = m_ref[...].astype(f32)                                   # (TB, S)
        denom = jnp.maximum(jnp.sum(m, axis=1, keepdims=True), 1e-6)
        m_scaled = (m / denom)[:, None, :]                           # (TB, 1, S)
        # Masked mean as a batched MXU contraction over S (no (TB,S,H) temporary).
        p = jnp.einsum("bqs,bsh->bqh", m_scaled, f,
                       preferred_element_type=f32)                   # (TB, 1, H)
        return p[:, 0, :]                                            # (TB, H)

    # Fuse the two views: one (2*TB, .) pass through both dense layers.
    # reps = cat([z2, z1], 0), so put view-2 rows first.
    p2 = pooled(f2_ref, m2_ref)                                      # rows [0, TB)
    p1 = pooled(f1_ref, m1_ref)                                      # rows [TB, 2TB)
    pc = jnp.concatenate([p2, p1], axis=0)                           # (2TB, H)

    h = jnp.dot(pc, wb_ref[...], preferred_element_type=f32) + bb_ref[...]   # (2TB, 256)
    z = jnp.dot(h, wp_ref[...], preferred_element_type=f32) + bp_ref[...]    # (2TB, 128)

    # F.normalize(p=2, dim=1) then torch.clamp(1e-5, 1 - 1e-5).  Padded lanes (>= 96)
    # are exactly 0 before the clamp; re-zero them after so the padding stays exact.
    norm = jnp.sqrt(jnp.sum(z * z, axis=1, keepdims=True))
    z = z / jnp.maximum(norm, 1e-12)
    z = jnp.clip(z, 1e-5, 1.0 - 1e-5)
    lane = lax.broadcasted_iota(jnp.int32, z.shape, 1)
    z = jnp.where(lane < PROJ_DIM, z, 0.0)

    b0 = pl.multiple_of(i * TB, TB)
    reps_ref[pl.ds(b0, TB), :] = z[:TB]            # z2 tile -> rows [b0, b0+TB)
    reps_ref[pl.ds(B + b0, TB), :] = z[TB:]        # z1 tile -> rows [B+b0, B+b0+TB)

    # ---- NT-Xent loss, once all batch tiles have been written ----
    @pl.when(i == pl.num_programs(0) - 1)
    def _():
        # TODO(synk): for very large batch, tile the (2B,2B) similarity/logsumexp
        # column-wise (flash-style online max/sum) and split the batch grid across
        # v7x's two TensorCores (CMEM reduction).
        reps = reps_ref[...]                                         # (2B, 128)
        if use_cosine_similarity:
            rn = jnp.sqrt(jnp.sum(reps * reps, axis=1, keepdims=True))
            reps_n = reps / jnp.maximum(rn, 1e-8)
        else:
            reps_n = reps

        inv_t = f32(1.0 / temperature)
        n2 = 2 * B

        # Similarity via MXU; contracting dim 1 with dim 1 avoids an explicit reps.T.
        sim = lax.dot_general(reps_n, reps_n,
                              dimension_numbers=(((1,), (1,)), ((), ())),
                              preferred_element_type=f32)            # (2B, 2B)

        # Positive term as a row-wise dot (same value for both halves of reps).
        pos_half = jnp.sum(reps_n[:B] * reps_n[B:], axis=1, keepdims=True)   # (B, 1)
        pos = jnp.concatenate([pos_half, pos_half], axis=0)                  # (2B, 1)

        # CrossEntropy(label=0) over [positive, negatives]:
        #   loss_i = -pos_i/T + logsumexp_{j != i}(sim_ij / T)
        # The self term is removed analytically (diag_i = |reps_n_i|^2), so no
        # (2B,2B) iota/mask/where temporaries are needed.
        diag = jnp.sum(reps_n * reps_n, axis=1, keepdims=True)               # (2B, 1)
        m = jnp.max(sim, axis=1, keepdims=True) * inv_t                      # (2B, 1)
        p = jnp.exp(sim * inv_t - m)                                         # (2B, 2B)
        s = jnp.sum(p, axis=1, keepdims=True) - jnp.exp(diag * inv_t - m)    # (2B, 1)
        lse = m + jnp.log(s)                                                 # (2B, 1)

        loss = jnp.sum(lse - pos * inv_t, axis=(0, 1), keepdims=True) / n2   # (1, 1)
        out_ref[...] = loss


def simclr_loss(features1, features2, mask1, mask2, params,
                temperature=0.5, use_cosine_similarity=True, batch_tile=None):
    """Scalar NT-Xent loss computed in a single gridded Pallas TPU kernel."""
    B, S, H = features1.shape
    wb, bb, wp, bp = params

    # Zero-pad weights to lane/MXU-aligned widths (padded rows/cols are 0 -> exact).
    wb_p = jnp.pad(wb.astype(jnp.float32),
                   ((0, 0), (0, BACKBONE_PAD - BACKBONE_DIM)))
    bb_p = jnp.pad(bb.astype(jnp.float32),
                   (0, BACKBONE_PAD - BACKBONE_DIM)).reshape(1, -1)
    wp_p = jnp.pad(wp.astype(jnp.float32),
                   ((0, BACKBONE_PAD - BACKBONE_DIM), (0, PROJ_PAD - PROJ_DIM)))
    bp_p = jnp.pad(bp.astype(jnp.float32),
                   (0, PROJ_PAD - PROJ_DIM)).reshape(1, -1)

    # Batch tile: multiple of 8 that divides B (mask BlockSpec sublane rule),
    # falling back to the full batch for small / odd sizes.
    if batch_tile is not None:
        TB = batch_tile
    else:
        TB = B
        for cand in (128, 64, 32, 16, 8):
            if B % cand == 0:
                TB = cand
                break
    num_tiles = B // TB
    n2 = 2 * B

    kernel = functools.partial(
        _simclr_kernel,
        batch_size=B,
        batch_tile=TB,
        temperature=float(temperature),
        use_cosine_similarity=bool(use_cosine_similarity),
    )

    feat_spec = pl.BlockSpec((TB, S, H), lambda i: (i, 0, 0))
    mask_spec = pl.BlockSpec((TB, S), lambda i: (i, 0))
    const2 = lambda i: (0, 0)

    grid_spec = pltpu.PrefetchScalarGridSpec(
        num_scalar_prefetch=0,
        grid=(num_tiles,),
        in_specs=[
            feat_spec, feat_spec, mask_spec, mask_spec,
            pl.BlockSpec((H, BACKBONE_PAD), const2),
            pl.BlockSpec((1, BACKBONE_PAD), const2),
            pl.BlockSpec((BACKBONE_PAD, PROJ_PAD), const2),
            pl.BlockSpec((1, PROJ_PAD), const2),
        ],
        out_specs=pl.BlockSpec((1, 1), const2),
        scratch_shapes=[pltpu.VMEM((n2, PROJ_PAD), jnp.float32)],
    )

    # VMEM budget sized from the actual buffers (+ headroom), clamped to safe limits.
    feat_bytes = jnp.dtype(features1.dtype).itemsize
    mask_bytes = jnp.dtype(mask1.dtype).itemsize
    weight_bytes = 4 * (H * BACKBONE_PAD + BACKBONE_PAD
                        + BACKBONE_PAD * PROJ_PAD + PROJ_PAD)
    vmem_bytes = (2 * 2 * TB * S * H * feat_bytes      # f1/f2 tiles, double-buffered
                  + 2 * 2 * TB * S * mask_bytes        # m1/m2 tiles, double-buffered
                  + 2 * weight_bytes                   # resident weights
                  + 4 * n2 * PROJ_PAD                  # reps scratch
                  + 2 * 4 * n2 * n2                    # sim + exp temporaries
                  + (4 << 20))                         # compiler scratch headroom
    vmem_bytes = int(min(max(vmem_bytes, 16 << 20), 64 << 20))

    cost = pl.CostEstimate(
        flops=int(2 * (2 * B * S * H)
                  + 2 * n2 * H * BACKBONE_PAD
                  + 2 * n2 * BACKBONE_PAD * PROJ_PAD
                  + 2 * n2 * PROJ_PAD * n2),
        transcendentals=int(n2 * n2 + 3 * n2),
        bytes_accessed=int(2 * B * S * H * feat_bytes + 2 * B * S * mask_bytes
                           + weight_bytes + 4),
    )

    out = pl.pallas_call(
        kernel,
        out_shape=jax.ShapeDtypeStruct((1, 1), jnp.float32),
        grid_spec=grid_spec,
        compiler_params=pltpu.CompilerParams(
            dimension_semantics=("arbitrary",),
            vmem_limit_bytes=vmem_bytes,
        ),
        cost_estimate=cost,
    )(features1, features2, mask1, mask2, wb_p, bb_p, wp_p, bp_p)
    return out[0, 0]


def init_params(key, hidden):
    """Deterministic nn.Linear-style init for the synthetic backbone head + projector."""
    kb_w, kb_b, kp_w, kp_b = jax.random.split(key, 4)
    lim_b = 1.0 / (hidden ** 0.5)
    lim_p = 1.0 / (BACKBONE_DIM ** 0.5)
    wb = jax.random.uniform(kb_w, (hidden, BACKBONE_DIM), jnp.float32, -lim_b, lim_b)
    bb = jax.random.uniform(kb_b, (BACKBONE_DIM,), jnp.float32, -lim_b, lim_b)
    wp = jax.random.uniform(kp_w, (BACKBONE_DIM, PROJ_DIM), jnp.float32, -lim_p, lim_p)
    bp = jax.random.uniform(kp_b, (PROJ_DIM,), jnp.float32, -lim_p, lim_p)
    return wb, bb, wp, bp


if __name__ == "__main__":
    B, S, H = 2, 8, 32
    key = jax.random.PRNGKey(0)
    k_par, k_f1, k_f2 = jax.random.split(key, 3)

    params = init_params(k_par, H)
    features1 = jax.random.normal(k_f1, (B, S, H), jnp.float32)
    features2 = jax.random.normal(k_f2, (B, S, H), jnp.float32)
    # mask1: all tokens valid; mask2: last 2 tokens masked out per example
    mask1 = jnp.ones((B, S), jnp.float32)
    mask2 = (jnp.arange(S)[None, :] < (S - 2)).astype(jnp.float32).repeat(B, axis=0)

    loss = simclr_loss(features1, features2, mask1, mask2, params,
                       temperature=0.5, use_cosine_similarity=True)
    jax.block_until_ready(loss)
    assert loss.shape == () and jnp.isfinite(loss)
    print("KERNEL_OK")
</pallas_src>

<mosaic_0001>
module attributes {stable_mosaic.version = 11 : i64} {
  func.func @_simclr_kernel(%arg0: i32, %arg1: memref<2x8x32xf32, #tpu.memory_space<vmem>>, %arg2: memref<2x8x32xf32, #tpu.memory_space<vmem>>, %arg3: memref<2x8xf32, #tpu.memory_space<vmem>>, %arg4: memref<2x8xf32, #tpu.memory_space<vmem>>, %arg5: memref<32x256xf32, #tpu.memory_space<vmem>>, %arg6: memref<1x256xf32, #tpu.memory_space<vmem>>, %arg7: memref<256x128xf32, #tpu.memory_space<vmem>>, %arg8: memref<1x128xf32, #tpu.memory_space<vmem>>, %arg9: memref<1x1xf32, #tpu.memory_space<vmem>>, %arg10: memref<4x128xf32, #tpu.memory_space<vmem>>) attributes {dimension_semantics = [#tpu.dimension_semantics<arbitrary>], iteration_bounds = array<i64: 1>, scalar_prefetch = 0 : i64, scratch_operands = 1 : i64, tpu.core_type = #tpu.core_type<tc>, window_params = [{transform_indices = @transform_0, window_bounds = array<i64: 2, 8, 32>}, {transform_indices = @transform_1, window_bounds = array<i64: 2, 8, 32>}, {transform_indices = @transform_2, window_bounds = array<i64: 2, 8>}, {transform_indices = @transform_3, window_bounds = array<i64: 2, 8>}, {pipeline_mode = #tpu.pipeline_mode<synchronous>, transform_indices = @transform_4, window_bounds = array<i64: 32, 256>}, {pipeline_mode = #tpu.pipeline_mode<synchronous>, transform_indices = @transform_5, window_bounds = array<i64: 1, 256>}, {pipeline_mode = #tpu.pipeline_mode<synchronous>, transform_indices = @transform_6, window_bounds = array<i64: 256, 128>}, {pipeline_mode = #tpu.pipeline_mode<synchronous>, transform_indices = @transform_7, window_bounds = array<i64: 1, 128>}, {pipeline_mode = #tpu.pipeline_mode<synchronous>, transform_indices = @transform_8, window_bounds = array<i64: 1, 1>}]} {
    %c0 = arith.constant 0 : index
    %c0_0 = arith.constant 0 : index
    %c0_1 = arith.constant 0 : index
    %0 = vector.load %arg2[%c0, %c0_0, %c0_1] : memref<2x8x32xf32, #tpu.memory_space<vmem>>, vector<2x8x32xf32>
    %c0_2 = arith.constant 0 : index
    %c0_3 = arith.constant 0 : index
    %1 = vector.load %arg4[%c0_2, %c0_3] : memref<2x8xf32, #tpu.memory_space<vmem>>, vector<2x8xf32>
    %cst = arith.constant dense<0.000000e+00> : vector<2xf32>
    %2 = vector.multi_reduction <add>, %1, %cst [1] : vector<2x8xf32> to vector<2xf32>
    %3 = vector.shape_cast %2 : vector<2xf32> to vector<2x1xf32>
    %cst_4 = arith.constant 9.99999997E-7 : f32
    %4 = vector.broadcast %cst_4 : f32 to vector<2x1xf32>
    %5 = arith.maximumf %3, %4 : vector<2x1xf32>
    %6 = vector.broadcast %5 : vector<2x1xf32> to vector<2x8xf32>
    %7 = arith.divf %1, %6 : vector<2x8xf32>
    %8 = vector.shape_cast %7 : vector<2x8xf32> to vector<2x1x8xf32>
    "tpu.trace_start"() <{level = 10 : i32, message = "bqs,bsh->bqh"}> : () -> ()
    %cst_5 = arith.constant dense<0.000000e+00> : vector<2x1x32xf32>
    %9 = tpu.matmul %8, %0, %cst_5 {dimension_numbers = #tpu.dot_dimension_numbers<[2], [1], [1], [2], [0, 0, 0, 1, 1, 2], [0], [0]>} : vector<2x1x8xf32>, vector<2x8x32xf32>, vector<2x1x32xf32> -> vector<2x1x32xf32>
    "tpu.trace_stop"() : () -> ()
    %10 = vector.shape_cast %9 : vector<2x1x32xf32> to vector<2x32xf32>
    %c0_6 = arith.constant 0 : index
    %c0_7 = arith.constant 0 : index
    %c0_8 = arith.constant 0 : index
    %11 = vector.load %arg1[%c0_6, %c0_7, %c0_8] : memref<2x8x32xf32, #tpu.memory_space<vmem>>, vector<2x8x32xf32>
    %c0_9 = arith.constant 0 : index
    %c0_10 = arith.constant 0 : index
    %12 = vector.load %arg3[%c0_9, %c0_10] : memref<2x8xf32, #tpu.memory_space<vmem>>, vector<2x8xf32>
    %cst_11 = arith.constant dense<0.000000e+00> : vector<2xf32>
    %13 = vector.multi_reduction <add>, %12, %cst_11 [1] : vector<2x8xf32> to vector<2xf32>
    %14 = vector.shape_cast %13 : vector<2xf32> to vector<2x1xf32>
    %cst_12 = arith.constant 9.99999997E-7 : f32
    %15 = vector.broadcast %cst_12 : f32 to vector<2x1xf32>
    %16 = arith.maximumf %14, %15 : vector<2x1xf32>
    %17 = vector.broadcast %16 : vector<2x1xf32> to vector<2x8xf32>
    %18 = arith.divf %12, %17 : vector<2x8xf32>
    %19 = vector.shape_cast %18 : vector<2x8xf32> to vector<2x1x8xf32>
    "tpu.trace_start"() <{level = 10 : i32, message = "bqs,bsh->bqh"}> : () -> ()
    %cst_13 = arith.constant dense<0.000000e+00> : vector<2x1x32xf32>
    %20 = tpu.matmul %19, %11, %cst_13 {dimension_numbers = #tpu.dot_dimension_numbers<[2], [1], [1], [2], [0, 0, 0, 1, 1, 2], [0], [0]>} : vector<2x1x8xf32>, vector<2x8x32xf32>, vector<2x1x32xf32> -> vector<2x1x32xf32>
    "tpu.trace_stop"() : () -> ()
    %21 = vector.shape_cast %20 : vector<2x1x32xf32> to vector<2x32xf32>
    %22 = tpu.concatenate %10, %21 in 0 : vector<2x32xf32>, vector<2x32xf32> -> vector<4x32xf32>
    %c0_14 = arith.constant 0 : index
    %c0_15 = arith.constant 0 : index
    %23 = vector.load %arg5[%c0_14, %c0_15] : memref<32x256xf32, #tpu.memory_space<vmem>>, vector<32x256xf32>
    %cst_16 = arith.constant dense<0.000000e+00> : vector<4x256xf32>
    %24 = tpu.matmul %22, %23, %cst_16 {dimension_numbers = #tpu.dot_dimension_numbers<[1], [0], [0], [1], [0, 0, 1, 1], [], []>} : vector<4x32xf32>, vector<32x256xf32>, vector<4x256xf32> -> vector<4x256xf32>
    %c0_17 = arith.constant 0 : index
    %c0_18 = arith.constant 0 : index
    %25 = vector.load %arg6[%c0_17, %c0_18] : memref<1x256xf32, #tpu.memory_space<vmem>>, vector<1x256xf32>
    %26 = vector.broadcast %25 : vector<1x256xf32> to vector<4x256xf32>
    %27 = arith.addf %24, %26 : vector<4x256xf32>
    %c0_19 = arith.constant 0 : index
    %c0_20 = arith.constant 0 : index
    %28 = vector.load %arg7[%c0_19, %c0_20] : memref<256x128xf32, #tpu.memory_space<vmem>>, vector<256x128xf32>
    %cst_21 = arith.constant dense<0.000000e+00> : vector<4x128xf32>
    %29 = tpu.matmul %27, %28, %cst_21 {dimension_numbers = #tpu.dot_dimension_numbers<[1], [0], [0], [1], [0, 0, 1, 1], [], []>} : vector<4x256xf32>, vector<256x128xf32>, vector<4x128xf32> -> vector<4x128xf32>
    %c0_22 = arith.constant 0 : index
    %c0_23 = arith.constant 0 : index
    %30 = vector.load %arg8[%c0_22, %c0_23] : memref<1x128xf32, #tpu.memory_space<vmem>>, vector<1x128xf32>
    %31 = vector.broadcast %30 : vector<1x128xf32> to vector<4x128xf32>
    %32 = arith.addf %29, %31 : vector<4x128xf32>
    %33 = arith.mulf %32, %32 : vector<4x128xf32>
    %cst_24 = arith.constant dense<0.000000e+00> : vector<4xf32>
    %34 = vector.multi_reduction <add>, %33, %cst_24 [1] : vector<4x128xf32> to vector<4xf32>
    %35 = vector.shape_cast %34 : vector<4xf32> to vector<4x1xf32>
    %36 = math.sqrt %35 : vector<4x1xf32>
    %cst_25 = arith.constant 9.99999996E-13 : f32
    %37 = vector.broadcast %cst_25 : f32 to vector<4x1xf32>
    %38 = arith.maximumf %36, %37 : vector<4x1xf32>
    %39 = vector.broadcast %38 : vector<4x1xf32> to vector<4x128xf32>
    %40 = arith.divf %32, %39 : vector<4x128xf32>
    %cst_26 = arith.constant 9.99999974E-6 : f32
    %cst_27 = arith.constant 0.999989986 : f32
    %41 = vector.broadcast %cst_26 : f32 to vector<4x128xf32>
    %42 = arith.maximumf %41, %40 : vector<4x128xf32>
    %43 = vector.broadcast %cst_27 : f32 to vector<4x128xf32>
    %44 = arith.minimumf %43, %42 : vector<4x128xf32>
    %45 = tpu.iota {dimensions = array<i32: 1>} : vector<4x128xi32>
    %c96_i32 = arith.constant 96 : i32
    %46 = vector.broadcast %c96_i32 : i32 to vector<4x128xi32>
    %47 = arith.cmpi slt, %45, %46 : vector<4x128xi32>
    %cst_28 = arith.constant 0.000000e+00 : f32
    %48 = vector.broadcast %cst_28 : f32 to vector<4x128xf32>
    %49 = arith.select %47, %44, %48 : vector<4x128xi1>, vector<4x128xf32>
    %c2_i32 = arith.constant 2 : i32
    %50 = arith.muli %arg0, %c2_i32 : i32
    %51 = tpu.assume_multiple %50, 2 : i32
    %52 = vector.extract_strided_slice %49 {offsets = [0, 0], sizes = [2, 128], strides = [1, 1]} : vector<4x128xf32> to vector<2x128xf32>
    %53 = arith.index_cast %51 : i32 to index
    %c0_29 = arith.constant 0 : index
    %54 = vector.load %arg10[%53, %c0_29] : memref<4x128xf32, #tpu.memory_space<vmem>>, vector<2x128xf32>
    tpu.vector_store %arg10[%53, %c0_29], %52 {strides = array<i32>} : memref<4x128xf32, #tpu.memory_space<vmem>>, vector<2x128xf32>,
    %55 = vector.extract_strided_slice %49 {offsets = [2, 0], sizes = [2, 128], strides = [1, 1]} : vector<4x128xf32> to vector<2x128xf32>
    %c2_i32_30 = arith.constant 2 : i32
    %56 = arith.addi %c2_i32_30, %51 : i32
    %57 = arith.index_cast %56 : i32 to index
    %c0_31 = arith.constant 0 : index
    %58 = vector.load %arg10[%57, %c0_31] : memref<4x128xf32, #tpu.memory_space<vmem>>, vector<2x128xf32>
    tpu.vector_store %arg10[%57, %c0_31], %55 {strides = array<i32>} : memref<4x128xf32, #tpu.memory_space<vmem>>, vector<2x128xf32>,
    %c0_i32 = arith.constant 0 : i32
    %59 = arith.cmpi eq, %arg0, %c0_i32 : i32
    %60 = arith.extui %59 : i1 to i32
    %c0_i32_32 = arith.constant 0 : i32
    %61 = arith.cmpi ne, %60, %c0_i32_32 : i32
    scf.if %61 {
      %c0_33 = arith.constant 0 : index
      %c0_34 = arith.constant 0 : index
      %62 = vector.load %arg10[%c0_33, %c0_34] : memref<4x128xf32, #tpu.memory_space<vmem>>, vector<4x128xf32>
      %63 = arith.mulf %62, %62 : vector<4x128xf32>
      %cst_35 = arith.constant dense<0.000000e+00> : vector<4xf32>
      %64 = vector.multi_reduction <add>, %63, %cst_35 [1] : vector<4x128xf32> to vector<4xf32>
      %65 = vector.shape_cast %64 : vector<4xf32> to vector<4x1xf32>
      %66 = math.sqrt %65 : vector<4x1xf32>
      %cst_36 = arith.constant 9.99999993E-9 : f32
      %67 = vector.broadcast %cst_36 : f32 to vector<4x1xf32>
      %68 = arith.maximumf %66, %67 : vector<4x1xf32>
      %69 = vector.broadcast %68 : vector<4x1xf32> to vector<4x128xf32>
      %70 = arith.divf %62, %69 : vector<4x128xf32>
      %cst_37 = arith.constant dense<0.000000e+00> : vector<4x4xf32>
      %71 = tpu.matmul %70, %70, %cst_37 {dimension_numbers = #tpu.dot_dimension_numbers<[1], [1], [0], [0], [0, 0, 1, 0], [], []>} : vector<4x128xf32>, vector<4x128xf32>, vector<4x4xf32> -> vector<4x4xf32>
      %72 = vector.extract_strided_slice %70 {offsets = [0, 0], sizes = [2, 128], strides = [1, 1]} : vector<4x128xf32> to vector<2x128xf32>
      %73 = vector.extract_strided_slice %70 {offsets = [2, 0], sizes = [2, 128], strides = [1, 1]} : vector<4x128xf32> to vector<2x128xf32>
      %74 = arith.mulf %72, %73 : vector<2x128xf32>
      %cst_38 = arith.constant dense<0.000000e+00> : vector<2xf32>
      %75 = vector.multi_reduction <add>, %74, %cst_38 [1] : vector<2x128xf32> to vector<2xf32>
      %76 = vector.shape_cast %75 : vector<2xf32> to vector<2x1xf32>
      %77 = tpu.concatenate %76, %76 in 0 : vector<2x1xf32>, vector<2x1xf32> -> vector<4x1xf32>
      %78 = arith.mulf %70, %70 : vector<4x128xf32>
      %cst_39 = arith.constant dense<0.000000e+00> : vector<4xf32>
      %79 = vector.multi_reduction <add>, %78, %cst_39 [1] : vector<4x128xf32> to vector<4xf32>
      %80 = vector.shape_cast %79 : vector<4xf32> to vector<4x1xf32>
      %cst_40 = arith.constant dense<0xFF800000> : vector<4xf32>
      %81 = vector.multi_reduction <maximumf>, %71, %cst_40 [1] : vector<4x4xf32> to vector<4xf32>
      %82 = vector.shape_cast %81 : vector<4xf32> to vector<4x1xf32>
      %cst_41 = arith.constant 2.000000e+00 : f32
      %83 = vector.broadcast %cst_41 : f32 to vector<4x1xf32>
      %84 = arith.mulf %82, %83 : vector<4x1xf32>
      %cst_42 = arith.constant 2.000000e+00 : f32
      %85 = vector.broadcast %cst_42 : f32 to vector<4x4xf32>
      %86 = arith.mulf %71, %85 : vector<4x4xf32>
      %87 = vector.broadcast %84 : vector<4x1xf32> to vector<4x4xf32>
      %88 = arith.subf %86, %87 : vector<4x4xf32>
      %89 = math.exp %88 : vector<4x4xf32>
      %cst_43 = arith.constant dense<0.000000e+00> : vector<4xf32>
      %90 = vector.multi_reduction <add>, %89, %cst_43 [1] : vector<4x4xf32> to vector<4xf32>
      %91 = vector.shape_cast %90 : vector<4xf32> to vector<4x1xf32>
      %cst_44 = arith.constant 2.000000e+00 : f32
      %92 = vector.broadcast %cst_44 : f32 to vector<4x1xf32>
      %93 = arith.mulf %80, %92 : vector<4x1xf32>
      %94 = arith.subf %93, %84 : vector<4x1xf32>
      %95 = math.exp %94 : vector<4x1xf32>
      %96 = arith.subf %91, %95 : vector<4x1xf32>
      %97 = math.log %96 : vector<4x1xf32>
      %98 = arith.addf %84, %97 : vector<4x1xf32>
      %cst_45 = arith.constant 2.000000e+00 : f32
      %99 = vector.broadcast %cst_45 : f32 to vector<4x1xf32>
      %100 = arith.mulf %77, %99 : vector<4x1xf32>
      %101 = arith.subf %98, %100 : vector<4x1xf32>
      %102 = vector.shape_cast %101 : vector<4x1xf32> to vector<1x4x1xf32>
      %cst_46 = arith.constant dense<0.000000e+00> : vector<1xf32>
      %103 = vector.multi_reduction <add>, %102, %cst_46 [1, 2] : vector<1x4x1xf32> to vector<1xf32>
      %104 = vector.shape_cast %103 : vector<1xf32> to vector<1x1x1xf32>
      %105 = vector.extract %104[0, 0, 0] : f32 from vector<1x1x1xf32>
      %106 = vector.broadcast %105 : f32 to vector<1x1xf32>
      %cst_47 = arith.constant 4.000000e+00 : f32
      %107 = vector.broadcast %cst_47 : f32 to vector<1x1xf32>
      %108 = arith.divf %106, %107 : vector<1x1xf32>
      %c0_48 = arith.constant 0 : index
      %c0_49 = arith.constant 0 : index
      %109 = vector.load %arg9[%c0_48, %c0_49] : memref<1x1xf32, #tpu.memory_space<vmem>>, vector<1x1xf32>
      tpu.vector_store %arg9[%c0_48, %c0_49], %108 {strides = array<i32>} : memref<1x1xf32, #tpu.memory_space<vmem>>, vector<1x1xf32>,
    } else {
    }
    return
  }
  func.func @transform_0(%arg0: i32) -> (i32, i32, i32) {
    %c0_i32 = arith.constant 0 : i32
    %c0_i32_0 = arith.constant 0 : i32
    %c0_i32_1 = arith.constant 0 : i32
    return %arg0, %c0_i32, %c0_i32_0 : i32, i32, i32
  }
  func.func @transform_1(%arg0: i32) -> (i32, i32, i32) {
    %c0_i32 = arith.constant 0 : i32
    %c0_i32_0 = arith.constant 0 : i32
    %c0_i32_1 = arith.constant 0 : i32
    return %arg0, %c0_i32, %c0_i32_0 : i32, i32, i32
  }
  func.func @transform_2(%arg0: i32) -> (i32, i32) {
    %c0_i32 = arith.constant 0 : i32
    %c0_i32_0 = arith.constant 0 : i32
    return %arg0, %c0_i32 : i32, i32
  }
  func.func @transform_3(%arg0: i32) -> (i32, i32) {
    %c0_i32 = arith.constant 0 : i32
    %c0_i32_0 = arith.constant 0 : i32
    return %arg0, %c0_i32 : i32, i32
  }
  func.func @transform_4(%arg0: i32) -> (i32, i32) {
    %c0_i32 = arith.constant 0 : i32
    %c0_i32_0 = arith.constant 0 : i32
    %c0_i32_1 = arith.constant 0 : i32
    return %c0_i32, %c0_i32_0 : i32, i32
  }
  func.func @transform_5(%arg0: i32) -> (i32, i32) {
    %c0_i32 = arith.constant 0 : i32
    %c0_i32_0 = arith.constant 0 : i32
    %c0_i32_1 = arith.constant 0 : i32
    return %c0_i32, %c0_i32_0 : i32, i32
  }
  func.func @transform_6(%arg0: i32) -> (i32, i32) {
    %c0_i32 = arith.constant 0 : i32
    %c0_i32_0 = arith.constant 0 : i32
    %c0_i32_1 = arith.constant 0 : i32
    return %c0_i32, %c0_i32_0 : i32, i32
  }
  func.func @transform_7(%arg0: i32) -> (i32, i32) {
    %c0_i32 = arith.constant 0 : i32
    %c0_i32_0 = arith.constant 0 : i32
    %c0_i32_1 = arith.constant 0 : i32
    return %c0_i32, %c0_i32_0 : i32, i32
  }
  func.func @transform_8(%arg0: i32) -> (i32, i32) {
    %c0_i32 = arith.constant 0 : i32
    %c0_i32_0 = arith.constant 0 : i32
    %c0_i32_1 = arith.constant 0 : i32
    return %c0_i32, %c0_i32_0 : i32, i32
  }
}

</mosaic_0001>

<llo_original>
// kernel: tpu_custom_call.1
$region0: #{tpu_custom_call.1}
  #allocation0 [shape = 'u32[]', space=smem, size = 0x4, offset = 0x4, fixed_abs, tag = 'smem constant byte address 0x4 - core index']
  #allocation1 [shape = 'u32[144,128]{1,0:T(1,128)}', space=vmem, size = 0x12000, scoped, tag = 'internal scratch']
  #allocation2 [shape = 'f32[4,128]{1,0:T(4,128)}', space=vmem, size = 0x800, scoped, tag = 'scratch operand']
  %s0 = inlined_call_operand.hbm [shape: f32[2,8,32], index: 0, kind: input, shape index: {}]
  %s1 = inlined_call_operand.hbm [shape: f32[2,8,32], index: 1, kind: input, shape index: {}]
  %s2 = inlined_call_operand.vmem [shape: f32[2,8], index: 2, kind: input, shape index: {}]
  %s3 = inlined_call_operand.vmem [shape: f32[2,8], index: 3, kind: input, shape index: {}]
  %s4 = inlined_call_operand.hbm [shape: f32[32,256], index: 4, kind: input, shape index: {}]
  %s5 = inlined_call_operand.vmem [shape: f32[1,256], index: 5, kind: input, shape index: {}]
  %s6 = inlined_call_operand.hbm [shape: f32[256,128], index: 6, kind: input, shape index: {}]
  %s7 = inlined_call_operand.vmem [shape: f32[1,128], index: 7, kind: input, shape index: {}]
  %s8 = inlined_call_operand.hbm [shape: f32[1,1], index: 8, kind: output, shape index: {}]
  %s9 = sld [smem:[#allocation0]]
  $region62: #{tpu_custom_call.1} parent=0
    _
  %s11 = ssub.s32 1, %s9
  %s12 = scalar_select 0, %s11, %s9
  $region1: #{tpu_custom_call.1} parent=0
    #allocation3 [shape = 'u8[8192]{0}', space=vmem, size = 0x2000, scoped, tag = 'input window, operand 0, single buffered']
    #allocation4 [shape = 's32[1]{0}', space=sflag, size = 0x4, scoped, tag = 'scoped memory for tpu_custom_call.1']
    #allocation5 [shape = 's32[1]{0}', space=sflag, size = 0x4, scoped, tag = 'scoped memory for tpu_custom_call.1']
    #allocation6 [shape = 'u8[8192]{0}', space=vmem, size = 0x2000, scoped, tag = 'input window, operand 1, single buffered']
    #allocation7 [shape = 's32[1]{0}', space=sflag, size = 0x4, scoped, tag = 'scoped memory for tpu_custom_call.1']
    #allocation8 [shape = 'u8[32768]{0}', space=vmem, size = 0x8000, scoped, tag = 'input window, operand 4, single buffered']
    #allocation9 [shape = 'u8[131072]{0}', space=vmem, size = 0x20000, scoped, tag = 'input window, operand 6, single buffered']
    #allocation10 [shape = 's32[1]{0}', space=sflag, size = 0x4, scoped, tag = 'scoped memory for tpu_custom_call.1']
    #allocation11 [shape = 'u8[512]{0}', space=vmem, size = 0x400, scoped, tag = 'output window, operand 0, single buffered']
    %13 = vsyncpa [#allocation4], 0
    %14 = vsyncpa [#allocation7], 0
    %15 = vsyncpa [#allocation10], 0
    %16 = vsyncpa [#allocation5], 0
    // Predicated region
    $region2: #{tpu_custom_call.1} parent=1 // pred_check
      _
    $region3: #{tpu_custom_call.1} parent=1 // pred_check_branch
      %18 = sbr.rel (0) target = $region5
    $region4: #{tpu_custom_call.1} parent=1 // pred_region
      %s20 = ssub.s32 256, 256
      %21 = vsyncadd [#allocation4], %s20
      %s22 = sshll.u32 [#allocation3], 4
      %s23 = int_to_ptr.vmem [resolvable:$true] %s22
      %28 = dma.hbm_to_vmem [thread:$0]  %s0, 256, %s23, [#allocation4], 128, 128, 8
    $region5: #{tpu_custom_call.1} parent=1 // pred_fallthru
      _
    // Predicated region
    $region6: #{tpu_custom_call.1} parent=1 // pred_check
      _
    $region7: #{tpu_custom_call.1} parent=1 // pred_check_branch
      %30 = sbr.rel (0) target = $region9
    $region8: #{tpu_custom_call.1} parent=1 // pred_region
      %s32 = ssub.s32 256, 256
      %33 = vsyncadd [#allocation7], %s32
      %s34 = sshll.u32 [#allocation6], 4
      %s35 = int_to_ptr.vmem [resolvable:$true] %s34
      %40 = dma.hbm_to_vmem [thread:$0]  %s1, 256, %s35, [#allocation7], 128, 128, 8
    $region9: #{tpu_custom_call.1} parent=1 // pred_fallthru
      _
    // Predicated region
    $region10: #{tpu_custom_call.1} parent=1 // pred_check
      _
    $region11: #{tpu_custom_call.1} parent=1 // pred_check_branch
      %42 = sbr.rel (0) target = $region13
    $region12: #{tpu_custom_call.1} parent=1 // pred_region
      _
    $region13: #{tpu_custom_call.1} parent=1 // pred_fallthru
      _
    // Predicated region
    $region14: #{tpu_custom_call.1} parent=1 // pred_check
      _
    $region15: #{tpu_custom_call.1} parent=1 // pred_check_branch
      %44 = sbr.rel (0) target = $region17
    $region16: #{tpu_custom_call.1} parent=1 // pred_region
      _
    $region17: #{tpu_custom_call.1} parent=1 // pred_fallthru
      _
    // Predicated region
    $region18: #{tpu_custom_call.1} parent=1 // pred_check
      _
    $region19: #{tpu_custom_call.1} parent=1 // pred_check_branch
      %46 = sbr.rel (0) target = $region21
    $region20: #{tpu_custom_call.1} parent=1 // pred_region
      %s48 = ssub.s32 1024, 1024
      %49 = vsyncadd [#allocation7], %s48
      %s50 = sshll.u32 [#allocation8], 4
      %s51 = int_to_ptr.vmem [resolvable:$true] %s50
      %56 = dma.hbm_to_vmem [thread:$0]  %s4, 1024, %s51, [#allocation7], 256, 256, 16
    $region21: #{tpu_custom_call.1} parent=1 // pred_fallthru
      _
    // Predicated region
    $region22: #{tpu_custom_call.1} parent=1 // pred_check
      _
    $region23: #{tpu_custom_call.1} parent=1 // pred_check_branch
      %58 = sbr.rel (0) target = $region25
    $region24: #{tpu_custom_call.1} parent=1 // pred_region
      _
    $region25: #{tpu_custom_call.1} parent=1 // pred_fallthru
      _
    // Predicated region
    $region26: #{tpu_custom_call.1} parent=1 // pred_check
      _
    $region27: #{tpu_custom_call.1} parent=1 // pred_check_branch
      %60 = sbr.rel (0) target = $region29
    $region28: #{tpu_custom_call.1} parent=1 // pred_region
      %s62 = ssub.s32 4096, 4096
      %63 = vsyncadd [#allocation10], %s62
      %s64 = sshll.u32 [#allocation9], 4
      %s65 = int_to_ptr.vmem [resolvable:$true] %s64
      %70 = dma.hbm_to_vmem [thread:$0]  %s6, 4096, %s65, [#allocation10], 128, 128, 8
    $region29: #{tpu_custom_call.1} parent=1 // pred_fallthru
      _
    // Predicated region
    $region30: #{tpu_custom_call.1} parent=1 // pred_check
      _
    $region31: #{tpu_custom_call.1} parent=1 // pred_check_branch
      %72 = sbr.rel (0) target = $region33
    $region32: #{tpu_custom_call.1} parent=1 // pred_region
      _
    $region33: #{tpu_custom_call.1} parent=1 // pred_fallthru
      _
    // Predicated region
    $region34: #{tpu_custom_call.1} parent=1 // pred_check
      _
    $region35: #{tpu_custom_call.1} parent=1 // pred_check_branch
      %74 = sbr.rel (0) target = $region37
    $region36: #{tpu_custom_call.1} parent=1 // pred_region
      %75 = dma.done [#allocation4], 256
    $region37: #{tpu_custom_call.1} parent=1 // pred_fallthru
      _
    // Predicated region
    $region38: #{tpu_custom_call.1} parent=1 // pred_check
      _
    $region39: #{tpu_custom_call.1} parent=1 // pred_check_branch
      %77 = sbr.rel (0) target = $region41
    $region40: #{tpu_custom_call.1} parent=1 // pred_region
      %78 = dma.done [#allocation7], 256
    $region41: #{tpu_custom_call.1} parent=1 // pred_fallthru
      _
    // Predicated region
    $region42: #{tpu_custom_call.1} parent=1 // pred_check
      _
    $region43: #{tpu_custom_call.1} parent=1 // pred_check_branch
      %80 = sbr.rel (0) target = $region45
    $region44: #{tpu_custom_call.1} parent=1 // pred_region
      %81 = dma.done [#allocation7], 1024
    $region45: #{tpu_custom_call.1} parent=1 // pred_fallthru
      _
    // Predicated region
    $region46: #{tpu_custom_call.1} parent=1 // pred_check
      _
    $region47: #{tpu_custom_call.1} parent=1 // pred_check_branch
      %83 = sbr.rel (0) target = $region49
    $region48: #{tpu_custom_call.1} parent=1 // pred_region
      %84 = dma.done [#allocation10], 4096
    $region49: #{tpu_custom_call.1} parent=1 // pred_fallthru
      _
    %v85 = vld [vmem:[#allocation6] sm:$0xff]
    %v86 = vld [vmem:[#allocation6 + $0x8] sm:$0xff]
    %v87 = vld [vmem:[%s3] sm:$0x3]
    %vm88 = vcmask 58368
    %v89 = vsel %vm88, %v87, 0.0
    %90 = vadd.xlane.f32.xlu0 %v89
    %v91 = vpop.xlane.xlu0 %90
    %v92 = vmax.f32 %v91, 1e-06
    %v93 = vrcp.pop %v92
    %v94 = vmul.f32 %v87, %v93
    %v97 = vunpack.c.l.s4 1966171168
    %v98 = vunpack.c.0.s8 %v97
    %v99 = vlaneseq
    %v100 = vshrl.u32 %v99, 7
    %v101 = vsub.s32 %v98, %v100
    %v102 = vrot.slane %v94, %v101
    %v103 = vcombine.high %v102, %v102
    %v105 = vunpack.c.l.s4 1966171168
    %v106 = vunpack.c.0.s8 %v105
    %v107 = vlaneseq
    %v108 = vshrl.u32 %v107, 7
    %v109 = vsub.s32 %v106, %v108
    %v110 = vrot.slane %v102, %v109
    %v112 = vunpack.c.l.s4 1966171168
    %v113 = vunpack.c.0.s8 %v112
    %v114 = vlaneseq
    %v115 = vshrl.u32 %v114, 7
    %v116 = vsub.s32 %v113, %v115
    %v117 = vrot.slane %v103, %v116
    %vm118 = vcmask 64512
    %v119 = vsel %vm118, %v110, 0
    %121 = vmatprep.subr.mxu0 0.0
    %122 = vmatpush1.msra.mxu0 %v85
    %123 = vmatprep.subr.mxu0 0.0
    %124 = vmatpush1.msra.mxu0 0.0
    %125 = vmatprep.subr.mxu0 0.0
    %126 = vmatpush1.msra.mxu0 0.0
    %127 = vmatprep.subr.mxu0 0.0
    %128 = vmatpush1.msra.mxu0 0.0
    %129 = vmatprep.subr.mxu0 0.0
    %130 = vmatpush1.msra.mxu0 0.0
    %131 = vmatprep.subr.mxu0 0.0
    %132 = vmatpush1.msra.mxu0 0.0
    %133 = vmatprep.subr.mxu0 0.0
    %134 = vmatpush1.msra.mxu0 0.0
    %135 = vmatprep.subr.mxu0 0.0
    %136 = vmatpush1.msra.mxu0 0.0
    %137 = vmatprep.subr.mxu0 0.0
    %138 = vmatpush1.msra.mxu0 0.0
    %139 = vmatprep.subr.mxu0 0.0
    %140 = vmatpush1.msra.mxu0 0.0
    %141 = vmatprep.subr.mxu0 0.0
    %142 = vmatpush1.msra.mxu0 0.0
    %143 = vmatprep.subr.mxu0 0.0
    %144 = vmatpush1.msra.mxu0 0.0
    %145 = vmatprep.subr.mxu0 0.0
    %146 = vmatpush1.msra.mxu0 0.0
    %147 = vmatprep.subr.mxu0 0.0
    %148 = vmatpush1.msra.mxu0 0.0
    %149 = vmatprep.subr.mxu0 0.0
    %150 = vmatpush1.msra.mxu0 0.0
    %151 = vmatprep.subr.mxu0 0.0
    %152 = vmatpush1.msra.mxu0 0.0
    %153 = vmatprep.subr.mxu0 0.0
    %154 = vmatpush1.msra.mxu0 0.0
    %155 = vmatprep.subr.mxu0 0.0
    %156 = vmatpush1.msra.mxu0 0.0
    %157 = vmatprep.subr.mxu0 0.0
    %158 = vmatpush1.msra.mxu0 0.0
    %159 = vmatprep.subr.mxu0 0.0
    %160 = vmatpush1.msra.mxu0 0.0
    %161 = vmatprep.subr.mxu0 0.0
    %162 = vmatpush1.msra.mxu0 0.0
    %163 = vmatprep.subr.mxu0 0.0
    %164 = vmatpush1.msra.mxu0 0.0
    %165 = vmatprep.subr.mxu0 0.0
    %166 = vmatpush1.msra.mxu0 0.0
    %167 = vmatprep.subr.mxu0 0.0
    %168 = vmatpush1.msra.mxu0 0.0
    %169 = vmatprep.subr.mxu0 0.0
    %170 = vmatpush1.msra.mxu0 0.0
    %171 = vmatprep.subr.mxu0 0.0
    %172 = vmatpush1.msra.mxu0 0.0
    %173 = vmatprep.subr.mxu0 0.0
    %174 = vmatpush1.msra.mxu0 0.0
    %175 = vmatprep.subr.mxu0 0.0
    %176 = vmatpush1.msra.mxu0 0.0
    %177 = vmatprep.subr.mxu0 0.0
    %178 = vmatpush1.msra.mxu0 0.0
    %179 = vmatprep.subr.mxu0 0.0
    %180 = vmatpush1.msra.mxu0 0.0
    %181 = vmatprep.subr.mxu0 0.0
    %182 = vmatpush1.msra.mxu0 0.0
    %183 = vmatprep.subr.mxu0 0.0
    %184 = vmatpush1.msra.mxu0 0.0
    %185 = vmatprep.mubr.f32.mxu0 0.0
    %186 = vmatmul.mubr.f32.gmra.mrb[0].mxu0 %v119
    %v187 = vpop.f32.mrb[0].mxu0
    %v188 = vadd.f32 0.0, %v187
    %v189 = vpop.f32.mrb[0].mxu0
    %190 = vdwg.mxu0
    %v191 = vsel %vm118, %v117, 0
    %193 = vmatprep.subr.mxu0 0.0
    %194 = vmatpush1.msra.mxu0 %v86
    %195 = vmatprep.subr.mxu0 0.0
    %196 = vmatpush1.msra.mxu0 0.0
    %197 = vmatprep.subr.mxu0 0.0
    %198 = vmatpush1.msra.mxu0 0.0
    %199 = vmatprep.subr.mxu0 0.0
    %200 = vmatpush1.msra.mxu0 0.0
    %201 = vmatprep.subr.mxu0 0.0
    %202 = vmatpush1.msra.mxu0 0.0
    %203 = vmatprep.subr.mxu0 0.0
    %204 = vmatpush1.msra.mxu0 0.0
    %205 = vmatprep.subr.mxu0 0.0
    %206 = vmatpush1.msra.mxu0 0.0
    %207 = vmatprep.subr.mxu0 0.0
    %208 = vmatpush1.msra.mxu0 0.0
    %209 = vmatprep.subr.mxu0 0.0
    %210 = vmatpush1.msra.mxu0 0.0
    %211 = vmatprep.subr.mxu0 0.0
    %212 = vmatpush1.msra.mxu0 0.0
    %213 = vmatprep.subr.mxu0 0.0
    %214 = vmatpush1.msra.mxu0 0.0
    %215 = vmatprep.subr.mxu0 0.0
    %216 = vmatpush1.msra.mxu0 0.0
    %217 = vmatprep.subr.mxu0 0.0
    %218 = vmatpush1.msra.mxu0 0.0
    %219 = vmatprep.subr.mxu0 0.0
    %220 = vmatpush1.msra.mxu0 0.0
    %221 = vmatprep.subr.mxu0 0.0
    %222 = vmatpush1.msra.mxu0 0.0
    %223 = vmatprep.subr.mxu0 0.0
    %224 = vmatpush1.msra.mxu0 0.0
    %225 = vmatprep.subr.mxu0 0.0
    %226 = vmatpush1.msra.mxu0 0.0
    %227 = vmatprep.subr.mxu0 0.0
    %228 = vmatpush1.msra.mxu0 0.0
    %229 = vmatprep.subr.mxu0 0.0
    %230 = vmatpush1.msra.mxu0 0.0
    %231 = vmatprep.subr.mxu0 0.0
    %232 = vmatpush1.msra.mxu0 0.0
    %233 = vmatprep.subr.mxu0 0.0
    %234 = vmatpush1.msra.mxu0 0.0
    %235 = vmatprep.subr.mxu0 0.0
    %236 = vmatpush1.msra.mxu0 0.0
    %237 = vmatprep.subr.mxu0 0.0
    %238 = vmatpush1.msra.mxu0 0.0
    %239 = vmatprep.subr.mxu0 0.0
    %240 = vmatpush1.msra.mxu0 0.0
    %241 = vmatprep.subr.mxu0 0.0
    %242 = vmatpush1.msra.mxu0 0.0
    %243 = vmatprep.subr.mxu0 0.0
    %244 = vmatpush1.msra.mxu0 0.0
    %245 = vmatprep.subr.mxu0 0.0
    %246 = vmatpush1.msra.mxu0 0.0
    %247 = vmatprep.subr.mxu0 0.0
    %248 = vmatpush1.msra.mxu0 0.0
    %249 = vmatprep.subr.mxu0 0.0
    %250 = vmatpush1.msra.mxu0 0.0
    %251 = vmatprep.subr.mxu0 0.0
    %252 = vmatpush1.msra.mxu0 0.0
    %253 = vmatprep.subr.mxu0 0.0
    %254 = vmatpush1.msra.mxu0 0.0
    %255 = vmatprep.subr.mxu0 0.0
    %256 = vmatpush1.msra.mxu0 0.0
    %257 = vmatprep.mubr.f32.mxu0 0.0
    %258 = vmatmul.mubr.f32.gmra.mrb[0].mxu0 %v191
    %v259 = vpop.f32.mrb[0].mxu0
    %v260 = vadd.f32 0.0, %v259
    %v261 = vpop.f32.mrb[0].mxu0
    %262 = vdwg.mxu0
    %v263 = vld [vmem:[#allocation3] sm:$0xff]
    %v264 = vld [vmem:[#allocation3 + $0x8] sm:$0xff]
    %v265 = vld [vmem:[%s2] sm:$0x3]
    %v266 = vsel %vm88, %v265, 0.0
    %267 = vadd.xlane.f32.xlu0 %v266
    %v268 = vpop.xlane.xlu0 %267
    %v269 = vmax.f32 %v268, 1e-06
    %v270 = vrcp.pop %v269
    %v271 = vmul.f32 %v265, %v270
    %v274 = vunpack.c.l.s4 1966171168
    %v275 = vunpack.c.0.s8 %v274
    %v276 = vlaneseq
    %v277 = vshrl.u32 %v276, 7
    %v278 = vsub.s32 %v275, %v277
    %v279 = vrot.slane %v271, %v278
    %v280 = vcombine.high %v279, %v279
    %v282 = vunpack.c.l.s4 1966171168
    %v283 = vunpack.c.0.s8 %v282
    %v284 = vlaneseq
    %v285 = vshrl.u32 %v284, 7
    %v286 = vsub.s32 %v283, %v285
    %v287 = vrot.slane %v279, %v286
    %v289 = vunpack.c.l.s4 1966171168
    %v290 = vunpack.c.0.s8 %v289
    %v291 = vlaneseq
    %v292 = vshrl.u32 %v291, 7
    %v293 = vsub.s32 %v290, %v292
    %v294 = vrot.slane %v280, %v293
    %v295 = vsel %vm118, %v287, 0
    %297 = vmatprep.subr.mxu0 0.0
    %298 = vmatpush1.msra.mxu0 %v263
    %299 = vmatprep.subr.mxu0 0.0
    %300 = vmatpush1.msra.mxu0 0.0
    %301 = vmatprep.subr.mxu0 0.0
    %302 = vmatpush1.msra.mxu0 0.0
    %303 = vmatprep.subr.mxu0 0.0
    %304 = vmatpush1.msra.mxu0 0.0
    %305 = vmatprep.subr.mxu0 0.0
    %306 = vmatpush1.msra.mxu0 0.0
    %307 = vmatprep.subr.mxu0 0.0
    %308 = vmatpush1.msra.mxu0 0.0
    %309 = vmatprep.subr.mxu0 0.0
    %310 = vmatpush1.msra.mxu0 0.0
    %311 = vmatprep.subr.mxu0 0.0
    %312 = vmatpush1.msra.mxu0 0.0
    %313 = vmatprep.subr.mxu0 0.0
    %314 = vmatpush1.msra.mxu0 0.0
    %315 = vmatprep.subr.mxu0 0.0
    %316 = vmatpush1.msra.mxu0 0.0
    %317 = vmatprep.subr.mxu0 0.0
    %318 = vmatpush1.msra.mxu0 0.0
    %319 = vmatprep.subr.mxu0 0.0
    %320 = vmatpush1.msra.mxu0 0.0
    %321 = vmatprep.subr.mxu0 0.0
    %322 = vmatpush1.msra.mxu0 0.0
    %323 = vmatprep.subr.mxu0 0.0
    %324 = vmatpush1.msra.mxu0 0.0
    %325 = vmatprep.subr.mxu0 0.0
    %326 = vmatpush1.msra.mxu0 0.0
    %327 = vmatprep.subr.mxu0 0.0
    %328 = vmatpush1.msra.mxu0 0.0
    %329 = vmatprep.subr.mxu0 0.0
    %330 = vmatpush1.msra.mxu0 0.0
    %331 = vmatprep.subr.mxu0 0.0
    %332 = vmatpush1.msra.mxu0 0.0
    %333 = vmatprep.subr.mxu0 0.0
    %334 = vmatpush1.msra.mxu0 0.0
    %335 = vmatprep.subr.mxu0 0.0
    %336 = vmatpush1.msra.mxu0 0.0
    %337 = vmatprep.subr.mxu0 0.0
    %338 = vmatpush1.msra.mxu0 0.0
    %339 = vmatprep.subr.mxu0 0.0
    %340 = vmatpush1.msra.mxu0 0.0
    %341 = vmatprep.subr.mxu0 0.0
    %342 = vmatpush1.msra.mxu0 0.0
    %343 = vmatprep.subr.mxu0 0.0
    %344 = vmatpush1.msra.mxu0 0.0
    %345 = vmatprep.subr.mxu0 0.0
    %346 = vmatpush1.msra.mxu0 0.0
    %347 = vmatprep.subr.mxu0 0.0
    %348 = vmatpush1.msra.mxu0 0.0
    %349 = vmatprep.subr.mxu0 0.0
    %350 = vmatpush1.msra.mxu0 0.0
    %351 = vmatprep.subr.mxu0 0.0
    %352 = vmatpush1.msra.mxu0 0.0
    %353 = vmatprep.subr.mxu0 0.0
    %354 = vmatpush1.msra.mxu0 0.0
    %355 = vmatprep.subr.mxu0 0.0
    %356 = vmatpush1.msra.mxu0 0.0
    %357 = vmatprep.subr.mxu0 0.0
    %358 = vmatpush1.msra.mxu0 0.0
    %359 = vmatprep.subr.mxu0 0.0
    %360 = vmatpush1.msra.mxu0 0.0
    %361 = vmatprep.mubr.f32.mxu0 0.0
    %362 = vmatmul.mubr.f32.gmra.mrb[0].mxu0 %v295
    %v363 = vpop.f32.mrb[0].mxu0
    %v364 = vadd.f32 0.0, %v363
    %v365 = vpop.f32.mrb[0].mxu0
    %366 = vdwg.mxu0
    %v367 = vsel %vm118, %v294, 0
    %369 = vmatprep.subr.mxu0 0.0
    %370 = vmatpush1.msra.mxu0 %v264
    %371 = vmatprep.subr.mxu0 0.0
    %372 = vmatpush1.msra.mxu0 0.0
    %373 = vmatprep.subr.mxu0 0.0
    %374 = vmatpush1.msra.mxu0 0.0
    %375 = vmatprep.subr.mxu0 0.0
    %376 = vmatpush1.msra.mxu0 0.0
    %377 = vmatprep.subr.mxu0 0.0
    %378 = vmatpush1.msra.mxu0 0.0
    %379 = vmatprep.subr.mxu0 0.0
    %380 = vmatpush1.msra.mxu0 0.0
    %381 = vmatprep.subr.mxu0 0.0
    %382 = vmatpush1.msra.mxu0 0.0
    %383 = vmatprep.subr.mxu0 0.0
    %384 = vmatpush1.msra.mxu0 0.0
    %385 = vmatprep.subr.mxu0 0.0
    %386 = vmatpush1.msra.mxu0 0.0
    %387 = vmatprep.subr.mxu0 0.0
    %388 = vmatpush1.msra.mxu0 0.0
    %389 = vmatprep.subr.mxu0 0.0
    %390 = vmatpush1.msra.mxu0 0.0
    %391 = vmatprep.subr.mxu0 0.0
    %392 = vmatpush1.msra.mxu0 0.0
    %393 = vmatprep.subr.mxu0 0.0
    %394 = vmatpush1.msra.mxu0 0.0
    %395 = vmatprep.subr.mxu0 0.0
    %396 = vmatpush1.msra.mxu0 0.0
    %397 = vmatprep.subr.mxu0 0.0
    %398 = vmatpush1.msra.mxu0 0.0
    %399 = vmatprep.subr.mxu0 0.0
    %400 = vmatpush1.msra.mxu0 0.0
    %401 = vmatprep.subr.mxu0 0.0
    %402 = vmatpush1.msra.mxu0 0.0
    %403 = vmatprep.subr.mxu0 0.0
    %404 = vmatpush1.msra.mxu0 0.0
    %405 = vmatprep.subr.mxu0 0.0
    %406 = vmatpush1.msra.mxu0 0.0
    %407 = vmatprep.subr.mxu0 0.0
    %408 = vmatpush1.msra.mxu0 0.0
    %409 = vmatprep.subr.mxu0 0.0
    %410 = vmatpush1.msra.mxu0 0.0
    %411 = vmatprep.subr.mxu0 0.0
    %412 = vmatpush1.msra.mxu0 0.0
    %413 = vmatprep.subr.mxu0 0.0
    %414 = vmatpush1.msra.mxu0 0.0
    %415 = vmatprep.subr.mxu0 0.0
    %416 = vmatpush1.msra.mxu0 0.0
    %417 = vmatprep.subr.mxu0 0.0
    %418 = vmatpush1.msra.mxu0 0.0
    %419 = vmatprep.subr.mxu0 0.0
    %420 = vmatpush1.msra.mxu0 0.0
    %421 = vmatprep.subr.mxu0 0.0
    %422 = vmatpush1.msra.mxu0 0.0
    %423 = vmatprep.subr.mxu0 0.0
    %424 = vmatpush1.msra.mxu0 0.0
    %425 = vmatprep.subr.mxu0 0.0
    %426 = vmatpush1.msra.mxu0 0.0
    %427 = vmatprep.subr.mxu0 0.0
    %428 = vmatpush1.msra.mxu0 0.0
    %429 = vmatprep.subr.mxu0 0.0
    %430 = vmatpush1.msra.mxu0 0.0
    %431 = vmatprep.subr.mxu0 0.0
    %432 = vmatpush1.msra.mxu0 0.0
    %433 = vmatprep.mubr.f32.mxu0 0.0
    %434 = vmatmul.mubr.f32.gmra.mrb[0].mxu0 %v367
    %v435 = vpop.f32.mrb[0].mxu0
    %v436 = vadd.f32 0.0, %v435
    %v437 = vpop.f32.mrb[0].mxu0
    %438 = vdwg.mxu0
    %v441 = vrot.slane %v260, 7
    %vm442 = vcmask 1041409
    %v443 = vsel %vm442, %v441, %v188
    %v447 = vrot.slane %v364, 6
    %v448 = vrot.slane %v436, 5
    %vm449 = vcmask 1043459
    %v450 = vsel %vm449, %v448, %v447
    %vm452 = vcmask 1041408
    %v453 = vsel %vm452, %v443, %v450
    %v454 = vld [vmem:[#allocation8] sm:$0xff]
    %v455 = vld [vmem:[#allocation8 + $0x8] sm:$0xff]
    %v456 = vld [vmem:[#allocation8 + $0x10] sm:$0xff]
    %v457 = vld [vmem:[#allocation8 + $0x18] sm:$0xff]
    %v458 = vld [vmem:[#allocation8 + $0x20] sm:$0xff]
    %v459 = vld [vmem:[#allocation8 + $0x28] sm:$0xff]
    %v460 = vld [vmem:[#allocation8 + $0x30] sm:$0xff]
    %v461 = vld [vmem:[#allocation8 + $0x38] sm:$0xff]
    %v462 = vld [vmem:[%s5] sm:$0x3]
    %v464 = vlaneseq
    %v465 = vshrl.u32 %v464, 7
    %v466 = vsub.s32 0, %v465
    %v467 = vrot.slane %v462, %v466
    %v468 = vlaneseq
    %v469 = vshrl.u32 %v468, 7
    %v470 = vsub.s32 1, %v469
    %v471 = vrot.slane %v462, %v470
    %vm474 = vcmask 261120
    %v476 = vsel %vm474, %v453, 0
    %478 = vmatprep.subr.mxu0 %v455
    %479 = vmatpush1.msra.mxu0 %v454
    %480 = vmatprep.subr.mxu0 %v457
    %481 = vmatpush1.msra.mxu0 %v456
    %482 = vmatprep.subr.mxu0 %v459
    %483 = vmatpush1.msra.mxu0 %v458
    %484 = vmatprep.subr.mxu0 %v461
    %485 = vmatpush1.msra.mxu0 %v460
    %486 = vmatprep.subr.mxu0 0.0
    %487 = vmatpush1.msra.mxu0 0.0
    %488 = vmatprep.subr.mxu0 0.0
    %489 = vmatpush1.msra.mxu0 0.0
    %490 = vmatprep.subr.mxu0 0.0
    %491 = vmatpush1.msra.mxu0 0.0
    %492 = vmatprep.subr.mxu0 0.0
    %493 = vmatpush1.msra.mxu0 0.0
    %494 = vmatprep.subr.mxu0 0.0
    %495 = vmatpush1.msra.mxu0 0.0
    %496 = vmatprep.subr.mxu0 0.0
    %497 = vmatpush1.msra.mxu0 0.0
    %498 = vmatprep.subr.mxu0 0.0
    %499 = vmatpush1.msra.mxu0 0.0
    %500 = vmatprep.subr.mxu0 0.0
    %501 = vmatpush1.msra.mxu0 0.0
    %502 = vmatprep.subr.mxu0 0.0
    %503 = vmatpush1.msra.mxu0 0.0
    %504 = vmatprep.subr.mxu0 0.0
    %505 = vmatpush1.msra.mxu0 0.0
    %506 = vmatprep.subr.mxu0 0.0
    %507 = vmatpush1.msra.mxu0 0.0
    %508 = vmatprep.subr.mxu0 0.0
    %509 = vmatpush1.msra.mxu0 0.0
    %510 = vmatprep.subr.mxu0 0.0
    %511 = vmatpush1.msra.mxu0 0.0
    %512 = vmatprep.subr.mxu0 0.0
    %513 = vmatpush1.msra.mxu0 0.0
    %514 = vmatprep.subr.mxu0 0.0
    %515 = vmatpush1.msra.mxu0 0.0
    %516 = vmatprep.subr.mxu0 0.0
    %517 = vmatpush1.msra.mxu0 0.0
    %518 = vmatprep.subr.mxu0 0.0
    %519 = vmatpush1.msra.mxu0 0.0
    %520 = vmatprep.subr.mxu0 0.0
    %521 = vmatpush1.msra.mxu0 0.0
    %522 = vmatprep.subr.mxu0 0.0
    %523 = vmatpush1.msra.mxu0 0.0
    %524 = vmatprep.subr.mxu0 0.0
    %525 = vmatpush1.msra.mxu0 0.0
    %526 = vmatprep.subr.mxu0 0.0
    %527 = vmatpush1.msra.mxu0 0.0
    %528 = vmatprep.subr.mxu0 0.0
    %529 = vmatpush1.msra.mxu0 0.0
    %530 = vmatprep.subr.mxu0 0.0
    %531 = vmatpush1.msra.mxu0 0.0
    %532 = vmatprep.subr.mxu0 0.0
    %533 = vmatpush1.msra.mxu0 0.0
    %534 = vmatprep.subr.mxu0 0.0
    %535 = vmatpush1.msra.mxu0 0.0
    %536 = vmatprep.subr.mxu0 0.0
    %537 = vmatpush1.msra.mxu0 0.0
    %538 = vmatprep.subr.mxu0 0.0
    %539 = vmatpush1.msra.mxu0 0.0
    %540 = vmatprep.subr.mxu0 0.0
    %541 = vmatpush1.msra.mxu0 0.0
    %542 = vmatprep.mubr.f32.mxu0 0.0
    %543 = vmatmul.mubr.f32.gmra.mrb[0].mxu0 %v476
    %v544 = vpop.f32.mrb[0].mxu0
    %v545 = vadd.f32 %v467, %v544
    %v546 = vpop.f32.mrb[0].mxu0
    %v547 = vadd.f32 %v471, %v546
    %548 = vdwg.mxu0
    %v549 = vld [vmem:[#allocation9] sm:$0xff]
    %v550 = vld [vmem:[#allocation9 + $0x8] sm:$0xff]
    %v551 = vld [vmem:[#allocation9 + $0x10] sm:$0xff]
    %v552 = vld [vmem:[#allocation9 + $0x18] sm:$0xff]
    %v553 = vld [vmem:[#allocation9 + $0x20] sm:$0xff]
    %v554 = vld [vmem:[#allocation9 + $0x28] sm:$0xff]
    %v555 = vld [vmem:[#allocation9 + $0x30] sm:$0xff]
    %v556 = vld [vmem:[#allocation9 + $0x38] sm:$0xff]
    %v557 = vld [vmem:[#allocation9 + $0x40] sm:$0xff]
    %v558 = vld [vmem:[#allocation9 + $0x48] sm:$0xff]
    %v559 = vld [vmem:[#allocation9 + $0x50] sm:$0xff]
    %v560 = vld [vmem:[#allocation9 + $0x58] sm:$0xff]
    %v561 = vld [vmem:[#allocation9 + $0x60] sm:$0xff]
    %v562 = vld [vmem:[#allocation9 + $0x68] sm:$0xff]
    %v563 = vld [vmem:[#allocation9 + $0x70] sm:$0xff]
    %v564 = vld [vmem:[#allocation9 + $0x78] sm:$0xff]
    %v565 = vld [vmem:[#allocation9 + $0x80] sm:$0xff]
    %v566 = vld [vmem:[#allocation9 + $0x88] sm:$0xff]
    %v567 = vld [vmem:[#allocation9 + $0x90] sm:$0xff]
    %v568 = vld [vmem:[#allocation9 + $0x98] sm:$0xff]
    %v569 = vld [vmem:[#allocation9 + $0xa0] sm:$0xff]
    %v570 = vld [vmem:[#allocation9 + $0xa8] sm:$0xff]
    %v571 = vld [vmem:[#allocation9 + $0xb0] sm:$0xff]
    %v572 = vld [vmem:[#allocation9 + $0xb8] sm:$0xff]
    %v573 = vld [vmem:[#allocation9 + $0xc0] sm:$0xff]
    %v574 = vld [vmem:[#allocation9 + $0xc8] sm:$0xff]
    %v575 = vld [vmem:[#allocation9 + $0xd0] sm:$0xff]
    %v576 = vld [vmem:[#allocation9 + $0xd8] sm:$0xff]
    %v577 = vld [vmem:[#allocation9 + $0xe0] sm:$0xff]
    %v578 = vld [vmem:[#allocation9 + $0xe8] sm:$0xff]
    %v579 = vld [vmem:[#allocation9 + $0xf0] sm:$0xff]
    %v580 = vld [vmem:[#allocation9 + $0xf8] sm:$0xff]
    %v581 = vld [vmem:[%s7] sm:$0x1]
    %v583 = vlaneseq
    %v584 = vshrl.u32 %v583, 7
    %v585 = vsub.s32 0, %v584
    %v586 = vrot.slane %v581, %v585
    %588 = vmatprep.subr.mxu0 0.0
    %589 = vmatpush1.msra.mxu0 %v549
    %590 = vmatprep.subr.mxu0 0.0
    %591 = vmatpush1.msra.mxu0 %v550
    %592 = vmatprep.subr.mxu0 0.0
    %593 = vmatpush1.msra.mxu0 %v551
    %594 = vmatprep.subr.mxu0 0.0
    %595 = vmatpush1.msra.mxu0 %v552
    %596 = vmatprep.subr.mxu0 0.0
    %597 = vmatpush1.msra.mxu0 %v553
    %598 = vmatprep.subr.mxu0 0.0
    %599 = vmatpush1.msra.mxu0 %v554
    %600 = vmatprep.subr.mxu0 0.0
    %601 = vmatpush1.msra.mxu0 %v555
    %602 = vmatprep.subr.mxu0 0.0
    %603 = vmatpush1.msra.mxu0 %v556
    %604 = vmatprep.subr.mxu0 0.0
    %605 = vmatpush1.msra.mxu0 %v557
    %606 = vmatprep.subr.mxu0 0.0
    %607 = vmatpush1.msra.mxu0 %v558
    %608 = vmatprep.subr.mxu0 0.0
    %609 = vmatpush1.msra.mxu0 %v559
    %610 = vmatprep.subr.mxu0 0.0
    %611 = vmatpush1.msra.mxu0 %v560
    %612 = vmatprep.subr.mxu0 0.0
    %613 = vmatpush1.msra.mxu0 %v561
    %614 = vmatprep.subr.mxu0 0.0
    %615 = vmatpush1.msra.mxu0 %v562
    %616 = vmatprep.subr.mxu0 0.0
    %617 = vmatpush1.msra.mxu0 %v563
    %618 = vmatprep.subr.mxu0 0.0
    %619 = vmatpush1.msra.mxu0 %v564
    %620 = vmatprep.subr.mxu0 0.0
    %621 = vmatpush1.msra.mxu0 %v565
    %622 = vmatprep.subr.mxu0 0.0
    %623 = vmatpush1.msra.mxu0 %v566
    %624 = vmatprep.subr.mxu0 0.0
    %625 = vmatpush1.msra.mxu0 %v567
    %626 = vmatprep.subr.mxu0 0.0
    %627 = vmatpush1.msra.mxu0 %v568
    %628 = vmatprep.subr.mxu0 0.0
    %629 = vmatpush1.msra.mxu0 %v569
    %630 = vmatprep.subr.mxu0 0.0
    %631 = vmatpush1.msra.mxu0 %v570
    %632 = vmatprep.subr.mxu0 0.0
    %633 = vmatpush1.msra.mxu0 %v571
    %634 = vmatprep.subr.mxu0 0.0
    %635 = vmatpush1.msra.mxu0 %v572
    %636 = vmatprep.subr.mxu0 0.0
    %637 = vmatpush1.msra.mxu0 %v573
    %638 = vmatprep.subr.mxu0 0.0
    %639 = vmatpush1.msra.mxu0 %v574
    %640 = vmatprep.subr.mxu0 0.0
    %641 = vmatpush1.msra.mxu0 %v575
    %642 = vmatprep.subr.mxu0 0.0
    %643 = vmatpush1.msra.mxu0 %v576
    %644 = vmatprep.subr.mxu0 0.0
    %645 = vmatpush1.msra.mxu0 %v577
    %646 = vmatprep.subr.mxu0 0.0
    %647 = vmatpush1.msra.mxu0 %v578
    %648 = vmatprep.subr.mxu0 0.0
    %649 = vmatpush1.msra.mxu0 %v579
    %650 = vmatprep.subr.mxu0 0.0
    %651 = vmatpush1.msra.mxu0 %v580
    %652 = vmatprep.mubr.f32.mxu0 %v547
    %653 = vmatmul.mubr.f32.gmra.mrb[0].mxu0 %v545
    %v654 = vpop.f32.mrb[0].mxu0
    %v655 = vadd.f32 %v586, %v654
    %v656 = vpop.f32.mrb[0].mxu0
    %657 = vdwg.mxu0
    %v658 = vmul.f32 %v655, %v655
    %vm659 = vcmask 1043456
    %v660 = vsel %vm659, %v658, 0.0
    %661 = vadd.xlane.f32.xlu0 %v660
    %v662 = vpop.xlane.xlu0 %661
    %v663 = vrsqrt.pop %v662
    %v664 = vmul.f32 %v662, %v663
    %vm665 = vcmp.eq.f32.partialorder %v662, inf
    %v666 = vsel %vm665, %v662, %v664
    %vm667 = vcmp.eq.f32.partialorder %v662, 0.0
    %v668 = vand.u32 %v662, 2147483648
    %v669 = vsel %vm667, %v668, %v666
    %v670 = vmax.f32 %v669, 1e-12
    %v671 = vrcp.pop %v670
    %v672 = vmul.f32 %v655, %v671
    %v673 = vmax.f32 %v672, 1e-05
    %v674 = vmin.f32 %v673, 0.99999
    %v675 = vlaneseq
    %v676 = vand.u32 %v675, 127
    %vm677 = vcmp.lt.s32.totalorder %v676, 96
    %v678 = vsel %vm677, %v674, 0.0
    %s679 = smul.u32 0, 2
    %s680 = scalar_lea.vmem [#allocation2], %s679
    %681 = vst [vmem:[%s680] sm:$0x3] %v678
    %s682 = sadd.s32 %s679, 2
    %s683 = scalar_lea.vmem [#allocation2], %s682
    %684 = vst [vmem:[%s683 - $0x2] sm:$0xc] %v678
    %p685 = scmp.eq.s32.totalorder 0, 0
    // Predicated region
    $region50: #{tpu_custom_call.1} parent=1 // pred_check
      %p686 = pneg %p685
    $region51: #{tpu_custom_call.1} parent=1 // pred_check_branch
      %688 = sbr.rel (%p686) target = $region53
    $region52: #{tpu_custom_call.1} parent=1 // pred_region
      %v689 = vld [vmem:[#allocation2] sm:$0xf]
      %v690 = vmul.f32 %v689, %v689
      %v691 = vsel %vm659, %v690, 0.0
      %692 = vadd.xlane.f32.xlu0 %v691
      %v693 = vpop.xlane.xlu0 %692
      %v694 = vrsqrt.pop %v693
      %v695 = vmul.f32 %v693, %v694
      %vm696 = vcmp.eq.f32.partialorder %v693, inf
      %v697 = vsel %vm696, %v693, %v695
      %vm698 = vcmp.eq.f32.partialorder %v693, 0.0
      %v699 = vand.u32 %v693, 2147483648
      %v700 = vsel %vm698, %v699, %v697
      %v701 = vmax.f32 %v700, 1e-08
      %v702 = vrcp.pop %v701
      %v703 = vmul.f32 %v689, %v702
      %704 = vmatprep.subr.mxu0 0.0
      %705 = vmatpush1.xpose.msra.mxu0 %v703
      %706 = vmatprep.subr.mxu0 0.0
      %707 = vmatpush1.xpose.msra.mxu0 0.0
      %708 = vmatprep.subr.mxu0 0.0
      %709 = vmatpush1.xpose.msra.mxu0 0.0
      %710 = vmatprep.subr.mxu0 0.0
      %711 = vmatpush1.xpose.msra.mxu0 0.0
      %712 = vmatprep.subr.mxu0 0.0
      %713 = vmatpush1.xpose.msra.mxu0 0.0
      %714 = vmatprep.subr.mxu0 0.0
      %715 = vmatpush1.xpose.msra.mxu0 0.0
      %716 = vmatprep.subr.mxu0 0.0
      %717 = vmatpush1.xpose.msra.mxu0 0.0
      %718 = vmatprep.subr.mxu0 0.0
      %719 = vmatpush1.xpose.msra.mxu0 0.0
      %720 = vmatprep.subr.mxu0 0.0
      %721 = vmatpush1.xpose.msra.mxu0 0.0
      %722 = vmatprep.subr.mxu0 0.0
      %723 = vmatpush1.xpose.msra.mxu0 0.0
      %724 = vmatprep.subr.mxu0 0.0
      %725 = vmatpush1.xpose.msra.mxu0 0.0
      %726 = vmatprep.subr.mxu0 0.0
      %727 = vmatpush1.xpose.msra.mxu0 0.0
      %728 = vmatprep.subr.mxu0 0.0
      %729 = vmatpush1.xpose.msra.mxu0 0.0
      %730 = vmatprep.subr.mxu0 0.0
      %731 = vmatpush1.xpose.msra.mxu0 0.0
      %732 = vmatprep.subr.mxu0 0.0
      %733 = vmatpush1.xpose.msra.mxu0 0.0
      %734 = vmatprep.subr.mxu0 0.0
      %735 = vmatpush1.xpose.msra.mxu0 0.0
      %736 = vmatprep.subr.mxu0 0.0
      %737 = vmatpush1.xpose.msra.mxu0 0.0
      %738 = vmatprep.subr.mxu0 0.0
      %739 = vmatpush1.xpose.msra.mxu0 0.0
      %740 = vmatprep.subr.mxu0 0.0
      %741 = vmatpush1.xpose.msra.mxu0 0.0
      %742 = vmatprep.subr.mxu0 0.0
      %743 = vmatpush1.xpose.msra.mxu0 0.0
      %744 = vmatprep.subr.mxu0 0.0
      %745 = vmatpush1.xpose.msra.mxu0 0.0
      %746 = vmatprep.subr.mxu0 0.0
      %747 = vmatpush1.xpose.msra.mxu0 0.0
      %748 = vmatprep.subr.mxu0 0.0
      %749 = vmatpush1.xpose.msra.mxu0 0.0
      %750 = vmatprep.subr.mxu0 0.0
      %751 = vmatpush1.xpose.msra.mxu0 0.0
      %752 = vmatprep.subr.mxu0 0.0
      %753 = vmatpush1.xpose.msra.mxu0 0.0
      %754 = vmatprep.subr.mxu0 0.0
      %755 = vmatpush1.xpose.msra.mxu0 0.0
      %756 = vmatprep.subr.mxu0 0.0
      %757 = vmatpush1.xpose.msra.mxu0 0.0
      %758 = vmatprep.subr.mxu0 0.0
      %759 = vmatpush1.xpose.msra.mxu0 0.0
      %760 = vmatprep.subr.mxu0 0.0
      %761 = vmatpush1.xpose.msra.mxu0 0.0
      %762 = vmatprep.subr.mxu0 0.0
      %763 = vmatpush1.xpose.msra.mxu0 0.0
      %764 = vmatprep.subr.mxu0 0.0
      %765 = vmatpush1.xpose.msra.mxu0 0.0
      %766 = vmatprep.subr.mxu0 0.0
      %767 = vmatpush1.xpose.msra.mxu0 0.0
      %768 = vmatprep.mubr.f32.mxu0 0.0
      %769 = vmatmul.mubr.f32.gmra.mrb[0].mxu0 %v703
      %v770 = vpop.f32.mrb[0].mxu0
      %v771 = vadd.f32 0.0, %v770
      %v772 = vpop.f32.mrb[0].mxu0
      %773 = vdwg.mxu0
      %v775 = vrot.slane %v703, 2
      %v777 = vmul.f32 %v703, %v775
      %v778 = vsel %vm452, %v777, 0.0
      %779 = vadd.xlane.f32.xlu0 %v778
      %v780 = vpop.xlane.xlu0 %779
      %v782 = vrot.slane %v780, 6
      %v784 = vsel %vm452, %v780, %v782
      %v785 = vmul.f32 %v703, %v703
      %v786 = vsel %vm659, %v785, 0.0
      %787 = vadd.xlane.f32.xlu0 %v786
      %v788 = vpop.xlane.xlu0 %787
      %vm789 = vcmask 27648
      %v790 = vsel %vm789, %v771, -inf
      %791 = vmax.xlane.f32.xlu0 %v790
      %v792 = vpop.xlane.xlu0 %791
      %v793 = vmul.f32 %v792, 2.0
      %v794 = vmul.f32 %v771, 2.0
      %v795 = vsub.f32 %v794, %v793
      %v796 = vmul.f32 %v795, 1.442695
      %v797 = vpow.pop %v796
      %v798 = vsel %vm789, %v797, 0.0
      %799 = vadd.xlane.f32.xlu0 %v798
      %v800 = vpop.xlane.xlu0 %799
      %v801 = vmul.f32 %v788, 2.0
      %v802 = vsub.f32 %v801, %v793
      %v803 = vmul.f32 %v802, 1.442695
      %v804 = vpow.pop %v803
      %v805 = vsub.f32 %v800, %v804
      %v806 = vlog2.pop %v805
      %v807 = vmul.f32 %v806, 0.6931472
      %v808 = vadd.f32 %v793, %v807
      %v809 = vmul.f32 %v784, 2.0
      %v810 = vsub.f32 %v808, %v809
      %vm811 = vcmask 3072
      %v812 = vsel %vm811, %v810, 0.0
      %813 = vadd.xlane.f32.xlu0 %v812
      %v814 = vpop.xlane.xlu0 %813
      %v815 = vrot.slane %v814, 4
      %v816 = vadd.f32 %v814, %v815
      %v817 = vrot.slane %v816, 2
      %v818 = vadd.f32 %v816, %v817
      %v819 = vrot.slane %v818, 1
      %v820 = vadd.f32 %v818, %v819
      %s821 = vtos %v820
      %v822 = vstv %s821
      %v823 = vrcp.pop 4.0
      %v824 = vmul.f32 %v822, %v823
      %vm825 = vcmask 0
      %826 = vst.msk [vmem:[#allocation11] sm:$0x1] %vm825, %v824
    $region53: #{tpu_custom_call.1} parent=1 // pred_fallthru
      _
    // Predicated region
    $region54: #{tpu_custom_call.1} parent=1 // pred_check
      _
    $region55: #{tpu_custom_call.1} parent=1 // pred_check_branch
      %828 = sbr.rel (0) target = $region57
    $region56: #{tpu_custom_call.1} parent=1 // pred_region
      %s830 = ssub.s32 16, 16
      %831 = vsyncadd [#allocation5], %s830
      %s833 = sshll.u32 [#allocation11], 4
      %s834 = int_to_ptr.vmem [resolvable:$true] %s833
      %836 = dma.vmem_to_hbm [thread:$0]  %s834, 16, %s8, [#allocation5]
    $region57: #{tpu_custom_call.1} parent=1 // pred_fallthru
      _
    // Predicated region
    $region58: #{tpu_custom_call.1} parent=1 // pred_check
      _
    $region59: #{tpu_custom_call.1} parent=1 // pred_check_branch
      %838 = sbr.rel (0) target = $region61
    $region60: #{tpu_custom_call.1} parent=1 // pred_region
      %839 = dma.done [#allocation5], 16
    $region61: #{tpu_custom_call.1} parent=1 // pred_fallthru
      _
    %840 = vsyncpa [#allocation4], 1
    %841 = vsyncpa [#allocation7], 1
    %842 = vsyncpa [#allocation10], 1
    %843 = vsyncpa [#allocation5], 1

</llo_original>
